<compile_context>
chip_gen: v7x
topology: tpu7x:2x2x1
jax: 0.10.0
libtpu: 0.0.40
codegen_flags: <defaults>
</compile_context>

<pallas_src>
import numpy as np
import jax
import jax.numpy as jnp
from jax.experimental import pallas as pl
from jax.experimental.pallas import tpu as pltpu

_LANE = 128


def _round_up(x, m):
    return (x + m - 1) // m * m


def fourier_mlp_kernel(obs_ref, wpack_ref, phase_ref, w1f_ref, b1_ref,
                       w2_ref, b2_ref, wo_ref, bo_ref, out_ref):
    F = w1f_ref.shape[0]                        # fourier_dim (static)
    h1 = b1_ref.shape[1]                        # hidden_sizes[0] (static)
    Fpad = wpack_ref.shape[1] - h1              # lane-aligned fourier width

    obs = obs_ref[...]                          # (TB, D)

    # One fused K=D matmul.  wpack columns:
    #   [0:F]        = [2pi*B_mat | 2pi*B_mat]
    #   [F:Fpad]     = zeros (lane-alignment pad)
    #   [Fpad:Fpad+h1] = W1[:D]   (the "obs" rows of the layer-1 weight)
    r = jnp.dot(obs, wpack_ref[...],
                preferred_element_type=jnp.float32)              # (TB, Fpad+h1)

    # Fourier features via a single phase-shifted sine (lane-0-aligned slice):
    #   [sin(p), cos(p)] == sin([p, p] + [0, pi/2])
    ff = jnp.sin(r[:, :F] + phase_ref[...])                      # (TB, F)

    # Layer 1: the obs-part of the concat-matmul is already in r[:, Fpad:]
    # (starts on a lane-tile boundary -> no cross-lane shuffle).
    h = r[:, Fpad:] + jnp.dot(ff, w1f_ref[...],
                              preferred_element_type=jnp.float32)
    h = jnp.maximum(h + b1_ref[...], 0.0)                        # ReLU

    # Layer 2
    h = jnp.dot(h, w2_ref[...], preferred_element_type=jnp.float32) + b2_ref[...]
    h = jnp.maximum(h, 0.0)                                      # ReLU

    # Output layer (no activation); Wout/bout are zero-padded to 128 lanes so
    # this store and its HBM write-back are lane-dense / unmasked.
    out_ref[...] = jnp.dot(h, wo_ref[...],
                           preferred_element_type=jnp.float32) + bo_ref[...]


def pack_params(params, input_dim):
    """One-time (outside the hot path) repacking of the torch-layout params."""
    D = input_dim
    B_mat = params["B_mat"].astype(jnp.float32)
    half_f = B_mat.shape[1]
    F = 2 * half_f
    Fpad = _round_up(F, _LANE)

    W1 = params["W1"].astype(jnp.float32)
    # Fused K=D weight: [2pi*B | 2pi*B | zero-pad | W1[:D]] -> (D, Fpad + h1)
    two_pi_B = (2.0 * jnp.pi) * B_mat
    wpack = jnp.concatenate(
        [two_pi_B, two_pi_B,
         jnp.zeros((D, Fpad - F), jnp.float32),
         W1[:D]], axis=1)
    # Rows of W1 that contract with [sin, cos]         -> (F, h1)
    w1f = W1[D:]
    # Phase row so that sin(p + phase) == [sin(p), cos(p)]
    phase = jnp.concatenate(
        [jnp.zeros((1, half_f), jnp.float32),
         jnp.full((1, half_f), jnp.pi / 2, jnp.float32)], axis=1)

    # Lane-dense output: pad Wout / bout columns to a multiple of 128.
    Wout = params["Wout"].astype(jnp.float32)
    bout = params["bout"].astype(jnp.float32)
    out_dim = Wout.shape[1]
    OP = _round_up(out_dim, _LANE)
    Wout_p = jnp.pad(Wout, ((0, 0), (0, OP - out_dim)))
    bout_p = jnp.pad(bout, ((0, 0), (0, OP - out_dim)))

    return {
        "wpack": wpack, "phase": phase, "w1f": w1f,
        "b1": params["b1"].astype(jnp.float32),
        "W2": params["W2"].astype(jnp.float32),
        "b2": params["b2"].astype(jnp.float32),
        "Wout": Wout_p, "bout": bout_p,
        "out_dim": out_dim,
    }


def fourier_mlp_forward(obs_nchw, packed, *, batch_tile=512):
    """obs_nchw: (B, C, H, W) float32.  Returns (B, output_dim) float32."""
    B = obs_nchw.shape[0]
    obs = obs_nchw.reshape(B, -1).astype(jnp.float32)            # flatten(1)
    D = obs.shape[1]
    F, h1 = packed["w1f"].shape
    h2 = packed["W2"].shape[1]
    Wp = packed["wpack"].shape[1]            # Fpad + h1
    OP = packed["Wout"].shape[1]             # padded output width (128-aligned)
    out_dim = packed["out_dim"]

    # Sublane-full batch tile; pad tiny batches up to a full tile.
    TB = min(batch_tile, _round_up(B, 8))
    Bp = _round_up(B, TB)
    if Bp != B:
        obs = jnp.pad(obs, ((0, Bp - B), (0, 0)))

    tile = lambda i: (i, 0)     # obs / out: walk the batch axis
    keep = lambda i: (0, 0)     # weights / biases: resident across the grid

    flops = 2 * Bp * (D * Wp + F * h1 + h1 * h2 + h2 * OP)
    bytes_accessed = 4 * (Bp * D + Bp * OP + D * Wp + F
                          + F * h1 + h1 + h1 * h2 + h2 + h2 * OP + OP)

    out = pl.pallas_call(
        fourier_mlp_kernel,
        out_shape=jax.ShapeDtypeStruct((Bp, OP), jnp.float32),
        grid=(Bp // TB,),
        in_specs=[
            pl.BlockSpec((TB, D), tile),          # obs (batch-tiled)
            pl.BlockSpec((D, Wp), keep),          # packed K=D weight
            pl.BlockSpec((1, F), keep),           # phase row
            pl.BlockSpec((F, h1), keep),          # W1 fourier rows
            pl.BlockSpec((1, h1), keep),          # b1
            pl.BlockSpec((h1, h2), keep),         # W2
            pl.BlockSpec((1, h2), keep),          # b2
            pl.BlockSpec((h2, OP), keep),         # Wout (lane-padded)
            pl.BlockSpec((1, OP), keep),          # bout (lane-padded)
        ],
        out_specs=pl.BlockSpec((TB, OP), tile),
        compiler_params=pltpu.CompilerParams(
            dimension_semantics=("parallel",)),   # megacore sharding on v7x
        cost_estimate=pl.CostEstimate(flops=flops,
                                      transcendentals=Bp * F,
                                      bytes_accessed=bytes_accessed),
    )(obs, packed["wpack"], packed["phase"], packed["w1f"], packed["b1"],
      packed["W2"], packed["b2"], packed["Wout"], packed["bout"])
    return out[:B, :out_dim]


def init_params(key, input_dim, fourier_dim, hidden_sizes, output_dim, sigma):
    """Deterministic synthetic parameters (shapes follow the torch module)."""
    ks = jax.random.split(key, 8)
    mlp_in = input_dim + fourier_dim          # concatenate_fourier=True
    h1, h2 = hidden_sizes

    def lin(k, fan_in, fan_out):
        bound = 1.0 / np.sqrt(fan_in)
        kw, kb = jax.random.split(k)
        W = jax.random.uniform(kw, (fan_in, fan_out), jnp.float32, -bound, bound)
        b = jax.random.uniform(kb, (1, fan_out), jnp.float32, -bound, bound)
        return W, b

    B_mat = sigma * jax.random.normal(ks[0], (input_dim, fourier_dim // 2),
                                      jnp.float32)
    W1, b1 = lin(ks[1], mlp_in, h1)
    W2, b2 = lin(ks[2], h1, h2)
    Wout, bout = lin(ks[3], h2, output_dim)
    return {"B_mat": B_mat, "W1": W1, "b1": b1,
            "W2": W2, "b2": b2, "Wout": Wout, "bout": bout}


def reference_forward(obs_nchw, params):
    """Pure-JAX reference mirroring the torch forward (for verification)."""
    obs = obs_nchw.reshape(obs_nchw.shape[0], -1).astype(jnp.float32)
    proj = 2.0 * jnp.pi * (obs @ params["B_mat"])
    ff = jnp.concatenate([jnp.sin(proj), jnp.cos(proj)], axis=-1)
    ff = jnp.concatenate([obs, ff], axis=-1)
    h = jnp.maximum(ff @ params["W1"] + params["b1"], 0.0)
    h = jnp.maximum(h @ params["W2"] + params["b2"], 0.0)
    return h @ params["Wout"] + params["bout"]


if __name__ == "__main__":
    # Small shapes consistent with the module: image obs (2, 4, 16, 16),
    # input_dim = 4*16*16 = 1024, fourier_dim=64, hidden=(32, 32), output=8.
    key = jax.random.PRNGKey(0)
    k_obs, k_par = jax.random.split(key)

    Bsz, C, H, W = 2, 4, 16, 16
    input_dim = C * H * W
    fourier_dim = 64
    hidden_sizes = (32, 32)
    output_dim = 8
    sigma = 1.0

    obs = jax.random.normal(k_obs, (Bsz, C, H, W), jnp.float32)
    params = init_params(k_par, input_dim, fourier_dim, hidden_sizes,
                         output_dim, sigma)

    packed = pack_params(params, input_dim)      # hoisted out of the hot path
    out = fourier_mlp_forward(obs, packed)
    out = jax.block_until_ready(out)

    ref = reference_forward(obs, params)
    # Tolerance covers ulp-level differences from the cos(x)=sin(x+pi/2)
    # fusion, the 2*pi fold into B (phase/argument rounds at |proj|~O(100)),
    # and MXU accumulation order.
    np.testing.assert_allclose(np.asarray(out), np.asarray(ref),
                               rtol=1e-4, atol=5e-4)
    print("KERNEL_OK")
</pallas_src>

<mosaic_0001>
module attributes {stable_mosaic.version = 11 : i64} {
  func.func @fourier_mlp_kernel(%arg0: i32, %arg1: memref<8x1024xf32, #tpu.memory_space<vmem>>, %arg2: memref<1024x160xf32, #tpu.memory_space<vmem>>, %arg3: memref<1x64xf32, #tpu.memory_space<vmem>>, %arg4: memref<64x32xf32, #tpu.memory_space<vmem>>, %arg5: memref<1x32xf32, #tpu.memory_space<vmem>>, %arg6: memref<32x32xf32, #tpu.memory_space<vmem>>, %arg7: memref<1x32xf32, #tpu.memory_space<vmem>>, %arg8: memref<32x128xf32, #tpu.memory_space<vmem>>, %arg9: memref<1x128xf32, #tpu.memory_space<vmem>>, %arg10: memref<8x128xf32, #tpu.memory_space<vmem>>) attributes {dimension_semantics = [#tpu.dimension_semantics<parallel>], iteration_bounds = array<i64: 1>, scalar_prefetch = 0 : i64, scratch_operands = 0 : i64, tpu.core_type = #tpu.core_type<tc>, window_params = [{transform_indices = @transform_0, window_bounds = array<i64: 8, 1024>}, {pipeline_mode = #tpu.pipeline_mode<synchronous>, transform_indices = @transform_1, window_bounds = array<i64: 1024, 160>}, {pipeline_mode = #tpu.pipeline_mode<synchronous>, transform_indices = @transform_2, window_bounds = array<i64: 1, 64>}, {pipeline_mode = #tpu.pipeline_mode<synchronous>, transform_indices = @transform_3, window_bounds = array<i64: 64, 32>}, {pipeline_mode = #tpu.pipeline_mode<synchronous>, transform_indices = @transform_4, window_bounds = array<i64: 1, 32>}, {pipeline_mode = #tpu.pipeline_mode<synchronous>, transform_indices = @transform_5, window_bounds = array<i64: 32, 32>}, {pipeline_mode = #tpu.pipeline_mode<synchronous>, transform_indices = @transform_6, window_bounds = array<i64: 1, 32>}, {pipeline_mode = #tpu.pipeline_mode<synchronous>, transform_indices = @transform_7, window_bounds = array<i64: 32, 128>}, {pipeline_mode = #tpu.pipeline_mode<synchronous>, transform_indices = @transform_8, window_bounds = array<i64: 1, 128>}, {transform_indices = @transform_9, window_bounds = array<i64: 8, 128>}]} {
    %c0 = arith.constant 0 : index
    %c0_0 = arith.constant 0 : index
    %0 = vector.load %arg1[%c0, %c0_0] : memref<8x1024xf32, #tpu.memory_space<vmem>>, vector<8x1024xf32>
    %c0_1 = arith.constant 0 : index
    %c0_2 = arith.constant 0 : index
    %1 = vector.load %arg2[%c0_1, %c0_2] : memref<1024x160xf32, #tpu.memory_space<vmem>>, vector<1024x160xf32>
    %cst = arith.constant dense<0.000000e+00> : vector<8x160xf32>
    %2 = tpu.matmul %0, %1, %cst {dimension_numbers = #tpu.dot_dimension_numbers<[1], [0], [0], [1], [0, 0, 1, 1], [], []>} : vector<8x1024xf32>, vector<1024x160xf32>, vector<8x160xf32> -> vector<8x160xf32>
    %3 = vector.extract_strided_slice %2 {offsets = [0, 0], sizes = [8, 64], strides = [1, 1]} : vector<8x160xf32> to vector<8x64xf32>
    %c0_3 = arith.constant 0 : index
    %c0_4 = arith.constant 0 : index
    %4 = vector.load %arg3[%c0_3, %c0_4] : memref<1x64xf32, #tpu.memory_space<vmem>>, vector<1x64xf32>
    %5 = vector.broadcast %4 : vector<1x64xf32> to vector<8x64xf32>
    %6 = arith.addf %3, %5 : vector<8x64xf32>
    %7 = math.sin %6 : vector<8x64xf32>
    %8 = vector.extract_strided_slice %2 {offsets = [0, 128], sizes = [8, 32], strides = [1, 1]} : vector<8x160xf32> to vector<8x32xf32>
    %c0_5 = arith.constant 0 : index
    %c0_6 = arith.constant 0 : index
    %9 = vector.load %arg4[%c0_5, %c0_6] : memref<64x32xf32, #tpu.memory_space<vmem>>, vector<64x32xf32>
    %cst_7 = arith.constant dense<0.000000e+00> : vector<8x32xf32>
    %10 = tpu.matmul %7, %9, %cst_7 {dimension_numbers = #tpu.dot_dimension_numbers<[1], [0], [0], [1], [0, 0, 1, 1], [], []>} : vector<8x64xf32>, vector<64x32xf32>, vector<8x32xf32> -> vector<8x32xf32>
    %11 = arith.addf %8, %10 : vector<8x32xf32>
    %c0_8 = arith.constant 0 : index
    %c0_9 = arith.constant 0 : index
    %12 = vector.load %arg5[%c0_8, %c0_9] : memref<1x32xf32, #tpu.memory_space<vmem>>, vector<1x32xf32>
    %13 = vector.broadcast %12 : vector<1x32xf32> to vector<8x32xf32>
    %14 = arith.addf %11, %13 : vector<8x32xf32>
    %cst_10 = arith.constant 0.000000e+00 : f32
    %15 = vector.broadcast %cst_10 : f32 to vector<8x32xf32>
    %16 = arith.maximumf %14, %15 : vector<8x32xf32>
    %c0_11 = arith.constant 0 : index
    %c0_12 = arith.constant 0 : index
    %17 = vector.load %arg6[%c0_11, %c0_12] : memref<32x32xf32, #tpu.memory_space<vmem>>, vector<32x32xf32>
    %cst_13 = arith.constant dense<0.000000e+00> : vector<8x32xf32>
    %18 = tpu.matmul %16, %17, %cst_13 {dimension_numbers = #tpu.dot_dimension_numbers<[1], [0], [0], [1], [0, 0, 1, 1], [], []>} : vector<8x32xf32>, vector<32x32xf32>, vector<8x32xf32> -> vector<8x32xf32>
    %c0_14 = arith.constant 0 : index
    %c0_15 = arith.constant 0 : index
    %19 = vector.load %arg7[%c0_14, %c0_15] : memref<1x32xf32, #tpu.memory_space<vmem>>, vector<1x32xf32>
    %20 = vector.broadcast %19 : vector<1x32xf32> to vector<8x32xf32>
    %21 = arith.addf %18, %20 : vector<8x32xf32>
    %cst_16 = arith.constant 0.000000e+00 : f32
    %22 = vector.broadcast %cst_16 : f32 to vector<8x32xf32>
    %23 = arith.maximumf %21, %22 : vector<8x32xf32>
    %c0_17 = arith.constant 0 : index
    %c0_18 = arith.constant 0 : index
    %24 = vector.load %arg8[%c0_17, %c0_18] : memref<32x128xf32, #tpu.memory_space<vmem>>, vector<32x128xf32>
    %cst_19 = arith.constant dense<0.000000e+00> : vector<8x128xf32>
    %25 = tpu.matmul %23, %24, %cst_19 {dimension_numbers = #tpu.dot_dimension_numbers<[1], [0], [0], [1], [0, 0, 1, 1], [], []>} : vector<8x32xf32>, vector<32x128xf32>, vector<8x128xf32> -> vector<8x128xf32>
    %c0_20 = arith.constant 0 : index
    %c0_21 = arith.constant 0 : index
    %26 = vector.load %arg9[%c0_20, %c0_21] : memref<1x128xf32, #tpu.memory_space<vmem>>, vector<1x128xf32>
    %27 = vector.broadcast %26 : vector<1x128xf32> to vector<8x128xf32>
    %28 = arith.addf %25, %27 : vector<8x128xf32>
    %c0_22 = arith.constant 0 : index
    %c0_23 = arith.constant 0 : index
    %29 = vector.load %arg10[%c0_22, %c0_23] : memref<8x128xf32, #tpu.memory_space<vmem>>, vector<8x128xf32>
    tpu.vector_store %arg10[%c0_22, %c0_23], %28 {strides = array<i32>} : memref<8x128xf32, #tpu.memory_space<vmem>>, vector<8x128xf32>,
    return
  }
  func.func @transform_0(%arg0: i32) -> (i32, i32) {
    %c0_i32 = arith.constant 0 : i32
    %c0_i32_0 = arith.constant 0 : i32
    return %arg0, %c0_i32 : i32, i32
  }
  func.func @transform_1(%arg0: i32) -> (i32, i32) {
    %c0_i32 = arith.constant 0 : i32
    %c0_i32_0 = arith.constant 0 : i32
    %c0_i32_1 = arith.constant 0 : i32
    return %c0_i32, %c0_i32_0 : i32, i32
  }
  func.func @transform_2(%arg0: i32) -> (i32, i32) {
    %c0_i32 = arith.constant 0 : i32
    %c0_i32_0 = arith.constant 0 : i32
    %c0_i32_1 = arith.constant 0 : i32
    return %c0_i32, %c0_i32_0 : i32, i32
  }
  func.func @transform_3(%arg0: i32) -> (i32, i32) {
    %c0_i32 = arith.constant 0 : i32
    %c0_i32_0 = arith.constant 0 : i32
    %c0_i32_1 = arith.constant 0 : i32
    return %c0_i32, %c0_i32_0 : i32, i32
  }
  func.func @transform_4(%arg0: i32) -> (i32, i32) {
    %c0_i32 = arith.constant 0 : i32
    %c0_i32_0 = arith.constant 0 : i32
    %c0_i32_1 = arith.constant 0 : i32
    return %c0_i32, %c0_i32_0 : i32, i32
  }
  func.func @transform_5(%arg0: i32) -> (i32, i32) {
    %c0_i32 = arith.constant 0 : i32
    %c0_i32_0 = arith.constant 0 : i32
    %c0_i32_1 = arith.constant 0 : i32
    return %c0_i32, %c0_i32_0 : i32, i32
  }
  func.func @transform_6(%arg0: i32) -> (i32, i32) {
    %c0_i32 = arith.constant 0 : i32
    %c0_i32_0 = arith.constant 0 : i32
    %c0_i32_1 = arith.constant 0 : i32
    return %c0_i32, %c0_i32_0 : i32, i32
  }
  func.func @transform_7(%arg0: i32) -> (i32, i32) {
    %c0_i32 = arith.constant 0 : i32
    %c0_i32_0 = arith.constant 0 : i32
    %c0_i32_1 = arith.constant 0 : i32
    return %c0_i32, %c0_i32_0 : i32, i32
  }
  func.func @transform_8(%arg0: i32) -> (i32, i32) {
    %c0_i32 = arith.constant 0 : i32
    %c0_i32_0 = arith.constant 0 : i32
    %c0_i32_1 = arith.constant 0 : i32
    return %c0_i32, %c0_i32_0 : i32, i32
  }
  func.func @transform_9(%arg0: i32) -> (i32, i32) {
    %c0_i32 = arith.constant 0 : i32
    %c0_i32_0 = arith.constant 0 : i32
    return %arg0, %c0_i32 : i32, i32
  }
}

</mosaic_0001>

<llo_original>
// kernel: tpu_custom_call.1
$region0: #{tpu_custom_call.1}
  #allocation0 [shape = 'u32[]', space=smem, size = 0x4, offset = 0x4, fixed_abs, tag = 'smem constant byte address 0x4 - core index']
  #allocation1 [shape = 'u32[144,128]{1,0:T(1,128)}', space=vmem, size = 0x12000, scoped, tag = 'internal scratch']
  %s0 = inlined_call_operand.vmem [shape: f32[8,1024], index: 0, kind: input, shape index: {}]
  %s1 = inlined_call_operand.vmem [shape: f32[1024,160], index: 1, kind: input, shape index: {}]
  %s2 = inlined_call_operand.vmem [shape: f32[1,64], index: 2, kind: input, shape index: {}]
  %s3 = inlined_call_operand.vmem [shape: f32[64,32], index: 3, kind: input, shape index: {}]
  %s4 = inlined_call_operand.vmem [shape: f32[1,32], index: 4, kind: input, shape index: {}]
  %s5 = inlined_call_operand.vmem [shape: f32[32,32], index: 5, kind: input, shape index: {}]
  %s6 = inlined_call_operand.vmem [shape: f32[1,32], index: 6, kind: input, shape index: {}]
  %s7 = inlined_call_operand.vmem [shape: f32[32,128], index: 7, kind: input, shape index: {}]
  %s8 = inlined_call_operand.vmem [shape: f32[1,128], index: 8, kind: input, shape index: {}]
  %s9 = inlined_call_operand.hbm [shape: f32[8,128], index: 9, kind: output, shape index: {}]
  %s10 = sld [smem:[#allocation0]]
  $region46: #{tpu_custom_call.1} parent=0
    _
  %s12 = ssub.s32 1, %s10
  %s13 = scalar_select 0, %s12, %s10
  $region1: #{tpu_custom_call.1} parent=0
    #allocation2 [shape = 'u8[4096]{0}', space=vmem, size = 0x1000, scoped, tag = 'output window, operand 0, single buffered']
    #allocation3 [shape = 's32[1]{0}', space=sflag, size = 0x4, scoped, tag = 'scoped memory for tpu_custom_call.1']
    %14 = vsyncpa [#allocation3], 0
    // Predicated region
    $region2: #{tpu_custom_call.1} parent=1 // pred_check
      _
    $region3: #{tpu_custom_call.1} parent=1 // pred_check_branch
      %16 = sbr.rel (0) target = $region5
    $region4: #{tpu_custom_call.1} parent=1 // pred_region
      _
    $region5: #{tpu_custom_call.1} parent=1 // pred_fallthru
      _
    // Predicated region
    $region6: #{tpu_custom_call.1} parent=1 // pred_check
      _
    $region7: #{tpu_custom_call.1} parent=1 // pred_check_branch
      %18 = sbr.rel (0) target = $region9
    $region8: #{tpu_custom_call.1} parent=1 // pred_region
      _
    $region9: #{tpu_custom_call.1} parent=1 // pred_fallthru
      _
    // Predicated region
    $region10: #{tpu_custom_call.1} parent=1 // pred_check
      _
    $region11: #{tpu_custom_call.1} parent=1 // pred_check_branch
      %20 = sbr.rel (0) target = $region13
    $region12: #{tpu_custom_call.1} parent=1 // pred_region
      _
    $region13: #{tpu_custom_call.1} parent=1 // pred_fallthru
      _
    // Predicated region
    $region14: #{tpu_custom_call.1} parent=1 // pred_check
      _
    $region15: #{tpu_custom_call.1} parent=1 // pred_check_branch
      %22 = sbr.rel (0) target = $region17
    $region16: #{tpu_custom_call.1} parent=1 // pred_region
      _
    $region17: #{tpu_custom_call.1} parent=1 // pred_fallthru
      _
    // Predicated region
    $region18: #{tpu_custom_call.1} parent=1 // pred_check
      _
    $region19: #{tpu_custom_call.1} parent=1 // pred_check_branch
      %24 = sbr.rel (0) target = $region21
    $region20: #{tpu_custom_call.1} parent=1 // pred_region
      _
    $region21: #{tpu_custom_call.1} parent=1 // pred_fallthru
      _
    // Predicated region
    $region22: #{tpu_custom_call.1} parent=1 // pred_check
      _
    $region23: #{tpu_custom_call.1} parent=1 // pred_check_branch
      %26 = sbr.rel (0) target = $region25
    $region24: #{tpu_custom_call.1} parent=1 // pred_region
      _
    $region25: #{tpu_custom_call.1} parent=1 // pred_fallthru
      _
    // Predicated region
    $region26: #{tpu_custom_call.1} parent=1 // pred_check
      _
    $region27: #{tpu_custom_call.1} parent=1 // pred_check_branch
      %28 = sbr.rel (0) target = $region29
    $region28: #{tpu_custom_call.1} parent=1 // pred_region
      _
    $region29: #{tpu_custom_call.1} parent=1 // pred_fallthru
      _
    // Predicated region
    $region30: #{tpu_custom_call.1} parent=1 // pred_check
      _
    $region31: #{tpu_custom_call.1} parent=1 // pred_check_branch
      %30 = sbr.rel (0) target = $region33
    $region32: #{tpu_custom_call.1} parent=1 // pred_region
      _
    $region33: #{tpu_custom_call.1} parent=1 // pred_fallthru
      _
    // Predicated region
    $region34: #{tpu_custom_call.1} parent=1 // pred_check
      _
    $region35: #{tpu_custom_call.1} parent=1 // pred_check_branch
      %32 = sbr.rel (0) target = $region37
    $region36: #{tpu_custom_call.1} parent=1 // pred_region
      _
    $region37: #{tpu_custom_call.1} parent=1 // pred_fallthru
      _
    %v33 = vld [vmem:[%s0] sm:$0xff]
    %v34 = vld [vmem:[%s0 + $0x8] sm:$0xff]
    %v35 = vld [vmem:[%s0 + $0x10] sm:$0xff]
    %v36 = vld [vmem:[%s0 + $0x18] sm:$0xff]
    %v37 = vld [vmem:[%s0 + $0x20] sm:$0xff]
    %v38 = vld [vmem:[%s0 + $0x28] sm:$0xff]
    %v39 = vld [vmem:[%s0 + $0x30] sm:$0xff]
    %v40 = vld [vmem:[%s0 + $0x38] sm:$0xff]
    %v41 = vld [vmem:[%s1] sm:$0xff]
    %v42 = vld [vmem:[%s1 + $0x8] sm:$0xff]
    %v43 = vld [vmem:[%s1 + $0x10] sm:$0xff]
    %v44 = vld [vmem:[%s1 + $0x18] sm:$0xff]
    %v45 = vld [vmem:[%s1 + $0x20] sm:$0xff]
    %v46 = vld [vmem:[%s1 + $0x28] sm:$0xff]
    %v47 = vld [vmem:[%s1 + $0x30] sm:$0xff]
    %v48 = vld [vmem:[%s1 + $0x38] sm:$0xff]
    %v49 = vld [vmem:[%s1 + $0x40] sm:$0xff]
    %v50 = vld [vmem:[%s1 + $0x48] sm:$0xff]
    %v51 = vld [vmem:[%s1 + $0x50] sm:$0xff]
    %v52 = vld [vmem:[%s1 + $0x58] sm:$0xff]
    %v53 = vld [vmem:[%s1 + $0x60] sm:$0xff]
    %v54 = vld [vmem:[%s1 + $0x68] sm:$0xff]
    %v55 = vld [vmem:[%s1 + $0x70] sm:$0xff]
    %v56 = vld [vmem:[%s1 + $0x78] sm:$0xff]
    %v57 = vld [vmem:[%s1 + $0x80] sm:$0xff]
    %v58 = vld [vmem:[%s1 + $0x88] sm:$0xff]
    %v59 = vld [vmem:[%s1 + $0x90] sm:$0xff]
    %v60 = vld [vmem:[%s1 + $0x98] sm:$0xff]
    %v61 = vld [vmem:[%s1 + $0xa0] sm:$0xff]
    %v62 = vld [vmem:[%s1 + $0xa8] sm:$0xff]
    %v63 = vld [vmem:[%s1 + $0xb0] sm:$0xff]
    %v64 = vld [vmem:[%s1 + $0xb8] sm:$0xff]
    %v65 = vld [vmem:[%s1 + $0xc0] sm:$0xff]
    %v66 = vld [vmem:[%s1 + $0xc8] sm:$0xff]
    %v67 = vld [vmem:[%s1 + $0xd0] sm:$0xff]
    %v68 = vld [vmem:[%s1 + $0xd8] sm:$0xff]
    %v69 = vld [vmem:[%s1 + $0xe0] sm:$0xff]
    %v70 = vld [vmem:[%s1 + $0xe8] sm:$0xff]
    %v71 = vld [vmem:[%s1 + $0xf0] sm:$0xff]
    %v72 = vld [vmem:[%s1 + $0xf8] sm:$0xff]
    %v73 = vld [vmem:[%s1 + $0x100] sm:$0xff]
    %v74 = vld [vmem:[%s1 + $0x108] sm:$0xff]
    %v75 = vld [vmem:[%s1 + $0x110] sm:$0xff]
    %v76 = vld [vmem:[%s1 + $0x118] sm:$0xff]
    %v77 = vld [vmem:[%s1 + $0x120] sm:$0xff]
    %v78 = vld [vmem:[%s1 + $0x128] sm:$0xff]
    %v79 = vld [vmem:[%s1 + $0x130] sm:$0xff]
    %v80 = vld [vmem:[%s1 + $0x138] sm:$0xff]
    %v81 = vld [vmem:[%s1 + $0x140] sm:$0xff]
    %v82 = vld [vmem:[%s1 + $0x148] sm:$0xff]
    %v83 = vld [vmem:[%s1 + $0x150] sm:$0xff]
    %v84 = vld [vmem:[%s1 + $0x158] sm:$0xff]
    %v85 = vld [vmem:[%s1 + $0x160] sm:$0xff]
    %v86 = vld [vmem:[%s1 + $0x168] sm:$0xff]
    %v87 = vld [vmem:[%s1 + $0x170] sm:$0xff]
    %v88 = vld [vmem:[%s1 + $0x178] sm:$0xff]
    %v89 = vld [vmem:[%s1 + $0x180] sm:$0xff]
    %v90 = vld [vmem:[%s1 + $0x188] sm:$0xff]
    %v91 = vld [vmem:[%s1 + $0x190] sm:$0xff]
    %v92 = vld [vmem:[%s1 + $0x198] sm:$0xff]
    %v93 = vld [vmem:[%s1 + $0x1a0] sm:$0xff]
    %v94 = vld [vmem:[%s1 + $0x1a8] sm:$0xff]
    %v95 = vld [vmem:[%s1 + $0x1b0] sm:$0xff]
    %v96 = vld [vmem:[%s1 + $0x1b8] sm:$0xff]
    %v97 = vld [vmem:[%s1 + $0x1c0] sm:$0xff]
    %v98 = vld [vmem:[%s1 + $0x1c8] sm:$0xff]
    %v99 = vld [vmem:[%s1 + $0x1d0] sm:$0xff]
    %v100 = vld [vmem:[%s1 + $0x1d8] sm:$0xff]
    %v101 = vld [vmem:[%s1 + $0x1e0] sm:$0xff]
    %v102 = vld [vmem:[%s1 + $0x1e8] sm:$0xff]
    %v103 = vld [vmem:[%s1 + $0x1f0] sm:$0xff]
    %v104 = vld [vmem:[%s1 + $0x1f8] sm:$0xff]
    %v105 = vld [vmem:[%s1 + $0x200] sm:$0xff]
    %v106 = vld [vmem:[%s1 + $0x208] sm:$0xff]
    %v107 = vld [vmem:[%s1 + $0x210] sm:$0xff]
    %v108 = vld [vmem:[%s1 + $0x218] sm:$0xff]
    %v109 = vld [vmem:[%s1 + $0x220] sm:$0xff]
    %v110 = vld [vmem:[%s1 + $0x228] sm:$0xff]
    %v111 = vld [vmem:[%s1 + $0x230] sm:$0xff]
    %v112 = vld [vmem:[%s1 + $0x238] sm:$0xff]
    %v113 = vld [vmem:[%s1 + $0x240] sm:$0xff]
    %v114 = vld [vmem:[%s1 + $0x248] sm:$0xff]
    %v115 = vld [vmem:[%s1 + $0x250] sm:$0xff]
    %v116 = vld [vmem:[%s1 + $0x258] sm:$0xff]
    %v117 = vld [vmem:[%s1 + $0x260] sm:$0xff]
    %v118 = vld [vmem:[%s1 + $0x268] sm:$0xff]
    %v119 = vld [vmem:[%s1 + $0x270] sm:$0xff]
    %v120 = vld [vmem:[%s1 + $0x278] sm:$0xff]
    %v121 = vld [vmem:[%s1 + $0x280] sm:$0xff]
    %v122 = vld [vmem:[%s1 + $0x288] sm:$0xff]
    %v123 = vld [vmem:[%s1 + $0x290] sm:$0xff]
    %v124 = vld [vmem:[%s1 + $0x298] sm:$0xff]
    %v125 = vld [vmem:[%s1 + $0x2a0] sm:$0xff]
    %v126 = vld [vmem:[%s1 + $0x2a8] sm:$0xff]
    %v127 = vld [vmem:[%s1 + $0x2b0] sm:$0xff]
    %v128 = vld [vmem:[%s1 + $0x2b8] sm:$0xff]
    %v129 = vld [vmem:[%s1 + $0x2c0] sm:$0xff]
    %v130 = vld [vmem:[%s1 + $0x2c8] sm:$0xff]
    %v131 = vld [vmem:[%s1 + $0x2d0] sm:$0xff]
    %v132 = vld [vmem:[%s1 + $0x2d8] sm:$0xff]
    %v133 = vld [vmem:[%s1 + $0x2e0] sm:$0xff]
    %v134 = vld [vmem:[%s1 + $0x2e8] sm:$0xff]
    %v135 = vld [vmem:[%s1 + $0x2f0] sm:$0xff]
    %v136 = vld [vmem:[%s1 + $0x2f8] sm:$0xff]
    %v137 = vld [vmem:[%s1 + $0x300] sm:$0xff]
    %v138 = vld [vmem:[%s1 + $0x308] sm:$0xff]
    %v139 = vld [vmem:[%s1 + $0x310] sm:$0xff]
    %v140 = vld [vmem:[%s1 + $0x318] sm:$0xff]
    %v141 = vld [vmem:[%s1 + $0x320] sm:$0xff]
    %v142 = vld [vmem:[%s1 + $0x328] sm:$0xff]
    %v143 = vld [vmem:[%s1 + $0x330] sm:$0xff]
    %v144 = vld [vmem:[%s1 + $0x338] sm:$0xff]
    %v145 = vld [vmem:[%s1 + $0x340] sm:$0xff]
    %v146 = vld [vmem:[%s1 + $0x348] sm:$0xff]
    %v147 = vld [vmem:[%s1 + $0x350] sm:$0xff]
    %v148 = vld [vmem:[%s1 + $0x358] sm:$0xff]
    %v149 = vld [vmem:[%s1 + $0x360] sm:$0xff]
    %v150 = vld [vmem:[%s1 + $0x368] sm:$0xff]
    %v151 = vld [vmem:[%s1 + $0x370] sm:$0xff]
    %v152 = vld [vmem:[%s1 + $0x378] sm:$0xff]
    %v153 = vld [vmem:[%s1 + $0x380] sm:$0xff]
    %v154 = vld [vmem:[%s1 + $0x388] sm:$0xff]
    %v155 = vld [vmem:[%s1 + $0x390] sm:$0xff]
    %v156 = vld [vmem:[%s1 + $0x398] sm:$0xff]
    %v157 = vld [vmem:[%s1 + $0x3a0] sm:$0xff]
    %v158 = vld [vmem:[%s1 + $0x3a8] sm:$0xff]
    %v159 = vld [vmem:[%s1 + $0x3b0] sm:$0xff]
    %v160 = vld [vmem:[%s1 + $0x3b8] sm:$0xff]
    %v161 = vld [vmem:[%s1 + $0x3c0] sm:$0xff]
    %v162 = vld [vmem:[%s1 + $0x3c8] sm:$0xff]
    %v163 = vld [vmem:[%s1 + $0x3d0] sm:$0xff]
    %v164 = vld [vmem:[%s1 + $0x3d8] sm:$0xff]
    %v165 = vld [vmem:[%s1 + $0x3e0] sm:$0xff]
    %v166 = vld [vmem:[%s1 + $0x3e8] sm:$0xff]
    %v167 = vld [vmem:[%s1 + $0x3f0] sm:$0xff]
    %v168 = vld [vmem:[%s1 + $0x3f8] sm:$0xff]
    %v169 = vld [vmem:[%s1 + $0x400] sm:$0xff]
    %v170 = vld [vmem:[%s1 + $0x408] sm:$0xff]
    %v171 = vld [vmem:[%s1 + $0x410] sm:$0xff]
    %v172 = vld [vmem:[%s1 + $0x418] sm:$0xff]
    %v173 = vld [vmem:[%s1 + $0x420] sm:$0xff]
    %v174 = vld [vmem:[%s1 + $0x428] sm:$0xff]
    %v175 = vld [vmem:[%s1 + $0x430] sm:$0xff]
    %v176 = vld [vmem:[%s1 + $0x438] sm:$0xff]
    %v177 = vld [vmem:[%s1 + $0x440] sm:$0xff]
    %v178 = vld [vmem:[%s1 + $0x448] sm:$0xff]
    %v179 = vld [vmem:[%s1 + $0x450] sm:$0xff]
    %v180 = vld [vmem:[%s1 + $0x458] sm:$0xff]
    %v181 = vld [vmem:[%s1 + $0x460] sm:$0xff]
    %v182 = vld [vmem:[%s1 + $0x468] sm:$0xff]
    %v183 = vld [vmem:[%s1 + $0x470] sm:$0xff]
    %v184 = vld [vmem:[%s1 + $0x478] sm:$0xff]
    %v185 = vld [vmem:[%s1 + $0x480] sm:$0xff]
    %v186 = vld [vmem:[%s1 + $0x488] sm:$0xff]
    %v187 = vld [vmem:[%s1 + $0x490] sm:$0xff]
    %v188 = vld [vmem:[%s1 + $0x498] sm:$0xff]
    %v189 = vld [vmem:[%s1 + $0x4a0] sm:$0xff]
    %v190 = vld [vmem:[%s1 + $0x4a8] sm:$0xff]
    %v191 = vld [vmem:[%s1 + $0x4b0] sm:$0xff]
    %v192 = vld [vmem:[%s1 + $0x4b8] sm:$0xff]
    %v193 = vld [vmem:[%s1 + $0x4c0] sm:$0xff]
    %v194 = vld [vmem:[%s1 + $0x4c8] sm:$0xff]
    %v195 = vld [vmem:[%s1 + $0x4d0] sm:$0xff]
    %v196 = vld [vmem:[%s1 + $0x4d8] sm:$0xff]
    %v197 = vld [vmem:[%s1 + $0x4e0] sm:$0xff]
    %v198 = vld [vmem:[%s1 + $0x4e8] sm:$0xff]
    %v199 = vld [vmem:[%s1 + $0x4f0] sm:$0xff]
    %v200 = vld [vmem:[%s1 + $0x4f8] sm:$0xff]
    %v201 = vld [vmem:[%s1 + $0x500] sm:$0xff]
    %v202 = vld [vmem:[%s1 + $0x508] sm:$0xff]
    %v203 = vld [vmem:[%s1 + $0x510] sm:$0xff]
    %v204 = vld [vmem:[%s1 + $0x518] sm:$0xff]
    %v205 = vld [vmem:[%s1 + $0x520] sm:$0xff]
    %v206 = vld [vmem:[%s1 + $0x528] sm:$0xff]
    %v207 = vld [vmem:[%s1 + $0x530] sm:$0xff]
    %v208 = vld [vmem:[%s1 + $0x538] sm:$0xff]
    %v209 = vld [vmem:[%s1 + $0x540] sm:$0xff]
    %v210 = vld [vmem:[%s1 + $0x548] sm:$0xff]
    %v211 = vld [vmem:[%s1 + $0x550] sm:$0xff]
    %v212 = vld [vmem:[%s1 + $0x558] sm:$0xff]
    %v213 = vld [vmem:[%s1 + $0x560] sm:$0xff]
    %v214 = vld [vmem:[%s1 + $0x568] sm:$0xff]
    %v215 = vld [vmem:[%s1 + $0x570] sm:$0xff]
    %v216 = vld [vmem:[%s1 + $0x578] sm:$0xff]
    %v217 = vld [vmem:[%s1 + $0x580] sm:$0xff]
    %v218 = vld [vmem:[%s1 + $0x588] sm:$0xff]
    %v219 = vld [vmem:[%s1 + $0x590] sm:$0xff]
    %v220 = vld [vmem:[%s1 + $0x598] sm:$0xff]
    %v221 = vld [vmem:[%s1 + $0x5a0] sm:$0xff]
    %v222 = vld [vmem:[%s1 + $0x5a8] sm:$0xff]
    %v223 = vld [vmem:[%s1 + $0x5b0] sm:$0xff]
    %v224 = vld [vmem:[%s1 + $0x5b8] sm:$0xff]
    %v225 = vld [vmem:[%s1 + $0x5c0] sm:$0xff]
    %v226 = vld [vmem:[%s1 + $0x5c8] sm:$0xff]
    %v227 = vld [vmem:[%s1 + $0x5d0] sm:$0xff]
    %v228 = vld [vmem:[%s1 + $0x5d8] sm:$0xff]
    %v229 = vld [vmem:[%s1 + $0x5e0] sm:$0xff]
    %v230 = vld [vmem:[%s1 + $0x5e8] sm:$0xff]
    %v231 = vld [vmem:[%s1 + $0x5f0] sm:$0xff]
    %v232 = vld [vmem:[%s1 + $0x5f8] sm:$0xff]
    %v233 = vld [vmem:[%s1 + $0x600] sm:$0xff]
    %v234 = vld [vmem:[%s1 + $0x608] sm:$0xff]
    %v235 = vld [vmem:[%s1 + $0x610] sm:$0xff]
    %v236 = vld [vmem:[%s1 + $0x618] sm:$0xff]
    %v237 = vld [vmem:[%s1 + $0x620] sm:$0xff]
    %v238 = vld [vmem:[%s1 + $0x628] sm:$0xff]
    %v239 = vld [vmem:[%s1 + $0x630] sm:$0xff]
    %v240 = vld [vmem:[%s1 + $0x638] sm:$0xff]
    %v241 = vld [vmem:[%s1 + $0x640] sm:$0xff]
    %v242 = vld [vmem:[%s1 + $0x648] sm:$0xff]
    %v243 = vld [vmem:[%s1 + $0x650] sm:$0xff]
    %v244 = vld [vmem:[%s1 + $0x658] sm:$0xff]
    %v245 = vld [vmem:[%s1 + $0x660] sm:$0xff]
    %v246 = vld [vmem:[%s1 + $0x668] sm:$0xff]
    %v247 = vld [vmem:[%s1 + $0x670] sm:$0xff]
    %v248 = vld [vmem:[%s1 + $0x678] sm:$0xff]
    %v249 = vld [vmem:[%s1 + $0x680] sm:$0xff]
    %v250 = vld [vmem:[%s1 + $0x688] sm:$0xff]
    %v251 = vld [vmem:[%s1 + $0x690] sm:$0xff]
    %v252 = vld [vmem:[%s1 + $0x698] sm:$0xff]
    %v253 = vld [vmem:[%s1 + $0x6a0] sm:$0xff]
    %v254 = vld [vmem:[%s1 + $0x6a8] sm:$0xff]
    %v255 = vld [vmem:[%s1 + $0x6b0] sm:$0xff]
    %v256 = vld [vmem:[%s1 + $0x6b8] sm:$0xff]
    %v257 = vld [vmem:[%s1 + $0x6c0] sm:$0xff]
    %v258 = vld [vmem:[%s1 + $0x6c8] sm:$0xff]
    %v259 = vld [vmem:[%s1 + $0x6d0] sm:$0xff]
    %v260 = vld [vmem:[%s1 + $0x6d8] sm:$0xff]
    %v261 = vld [vmem:[%s1 + $0x6e0] sm:$0xff]
    %v262 = vld [vmem:[%s1 + $0x6e8] sm:$0xff]
    %v263 = vld [vmem:[%s1 + $0x6f0] sm:$0xff]
    %v264 = vld [vmem:[%s1 + $0x6f8] sm:$0xff]
    %v265 = vld [vmem:[%s1 + $0x700] sm:$0xff]
    %v266 = vld [vmem:[%s1 + $0x708] sm:$0xff]
    %v267 = vld [vmem:[%s1 + $0x710] sm:$0xff]
    %v268 = vld [vmem:[%s1 + $0x718] sm:$0xff]
    %v269 = vld [vmem:[%s1 + $0x720] sm:$0xff]
    %v270 = vld [vmem:[%s1 + $0x728] sm:$0xff]
    %v271 = vld [vmem:[%s1 + $0x730] sm:$0xff]
    %v272 = vld [vmem:[%s1 + $0x738] sm:$0xff]
    %v273 = vld [vmem:[%s1 + $0x740] sm:$0xff]
    %v274 = vld [vmem:[%s1 + $0x748] sm:$0xff]
    %v275 = vld [vmem:[%s1 + $0x750] sm:$0xff]
    %v276 = vld [vmem:[%s1 + $0x758] sm:$0xff]
    %v277 = vld [vmem:[%s1 + $0x760] sm:$0xff]
    %v278 = vld [vmem:[%s1 + $0x768] sm:$0xff]
    %v279 = vld [vmem:[%s1 + $0x770] sm:$0xff]
    %v280 = vld [vmem:[%s1 + $0x778] sm:$0xff]
    %v281 = vld [vmem:[%s1 + $0x780] sm:$0xff]
    %v282 = vld [vmem:[%s1 + $0x788] sm:$0xff]
    %v283 = vld [vmem:[%s1 + $0x790] sm:$0xff]
    %v284 = vld [vmem:[%s1 + $0x798] sm:$0xff]
    %v285 = vld [vmem:[%s1 + $0x7a0] sm:$0xff]
    %v286 = vld [vmem:[%s1 + $0x7a8] sm:$0xff]
    %v287 = vld [vmem:[%s1 + $0x7b0] sm:$0xff]
    %v288 = vld [vmem:[%s1 + $0x7b8] sm:$0xff]
    %v289 = vld [vmem:[%s1 + $0x7c0] sm:$0xff]
    %v290 = vld [vmem:[%s1 + $0x7c8] sm:$0xff]
    %v291 = vld [vmem:[%s1 + $0x7d0] sm:$0xff]
    %v292 = vld [vmem:[%s1 + $0x7d8] sm:$0xff]
    %v293 = vld [vmem:[%s1 + $0x7e0] sm:$0xff]
    %v294 = vld [vmem:[%s1 + $0x7e8] sm:$0xff]
    %v295 = vld [vmem:[%s1 + $0x7f0] sm:$0xff]
    %v296 = vld [vmem:[%s1 + $0x7f8] sm:$0xff]
    %297 = vmatprep.subr.mxu0 %v42
    %298 = vmatpush1.msra.mxu0 %v41
    %299 = vmatprep.subr.mxu0 %v44
    %300 = vmatpush1.msra.mxu0 %v43
    %301 = vmatprep.subr.mxu0 %v46
    %302 = vmatpush1.msra.mxu0 %v45
    %303 = vmatprep.subr.mxu0 %v48
    %304 = vmatpush1.msra.mxu0 %v47
    %305 = vmatprep.subr.mxu0 %v50
    %306 = vmatpush1.msra.mxu0 %v49
    %307 = vmatprep.subr.mxu0 %v52
    %308 = vmatpush1.msra.mxu0 %v51
    %309 = vmatprep.subr.mxu0 %v54
    %310 = vmatpush1.msra.mxu0 %v53
    %311 = vmatprep.subr.mxu0 %v56
    %312 = vmatpush1.msra.mxu0 %v55
    %313 = vmatprep.subr.mxu0 %v58
    %314 = vmatpush1.msra.mxu0 %v57
    %315 = vmatprep.subr.mxu0 %v60
    %316 = vmatpush1.msra.mxu0 %v59
    %317 = vmatprep.subr.mxu0 %v62
    %318 = vmatpush1.msra.mxu0 %v61
    %319 = vmatprep.subr.mxu0 %v64
    %320 = vmatpush1.msra.mxu0 %v63
    %321 = vmatprep.subr.mxu0 %v66
    %322 = vmatpush1.msra.mxu0 %v65
    %323 = vmatprep.subr.mxu0 %v68
    %324 = vmatpush1.msra.mxu0 %v67
    %325 = vmatprep.subr.mxu0 %v70
    %326 = vmatpush1.msra.mxu0 %v69
    %327 = vmatprep.subr.mxu0 %v72
    %328 = vmatpush1.msra.mxu0 %v71
    %329 = vmatprep.subr.mxu0 %v74
    %330 = vmatpush1.msra.mxu0 %v73
    %331 = vmatprep.subr.mxu0 %v76
    %332 = vmatpush1.msra.mxu0 %v75
    %333 = vmatprep.subr.mxu0 %v78
    %334 = vmatpush1.msra.mxu0 %v77
    %335 = vmatprep.subr.mxu0 %v80
    %336 = vmatpush1.msra.mxu0 %v79
    %337 = vmatprep.subr.mxu0 %v82
    %338 = vmatpush1.msra.mxu0 %v81
    %339 = vmatprep.subr.mxu0 %v84
    %340 = vmatpush1.msra.mxu0 %v83
    %341 = vmatprep.subr.mxu0 %v86
    %342 = vmatpush1.msra.mxu0 %v85
    %343 = vmatprep.subr.mxu0 %v88
    %344 = vmatpush1.msra.mxu0 %v87
    %345 = vmatprep.subr.mxu0 %v90
    %346 = vmatpush1.msra.mxu0 %v89
    %347 = vmatprep.subr.mxu0 %v92
    %348 = vmatpush1.msra.mxu0 %v91
    %349 = vmatprep.subr.mxu0 %v94
    %350 = vmatpush1.msra.mxu0 %v93
    %351 = vmatprep.subr.mxu0 %v96
    %352 = vmatpush1.msra.mxu0 %v95
    %353 = vmatprep.subr.mxu0 %v98
    %354 = vmatpush1.msra.mxu0 %v97
    %355 = vmatprep.subr.mxu0 %v100
    %356 = vmatpush1.msra.mxu0 %v99
    %357 = vmatprep.subr.mxu0 %v102
    %358 = vmatpush1.msra.mxu0 %v101
    %359 = vmatprep.subr.mxu0 %v104
    %360 = vmatpush1.msra.mxu0 %v103
    %361 = vmatprep.mubr.f32.mxu0 %v34
    %362 = vmatmul.mubr.f32.gmra.mrb[0].mxu0 %v33
    %v363 = vpop.f32.mrb[0].mxu0
    %v364 = vadd.f32 0.0, %v363
    %v365 = vpop.f32.mrb[0].mxu0
    %v366 = vadd.f32 0.0, %v365
    %367 = vdwg.mxu0
    %368 = vmatprep.subr.mxu0 %v106
    %369 = vmatpush1.msra.mxu0 %v105
    %370 = vmatprep.subr.mxu0 %v108
    %371 = vmatpush1.msra.mxu0 %v107
    %372 = vmatprep.subr.mxu0 %v110
    %373 = vmatpush1.msra.mxu0 %v109
    %374 = vmatprep.subr.mxu0 %v112
    %375 = vmatpush1.msra.mxu0 %v111
    %376 = vmatprep.subr.mxu0 %v114
    %377 = vmatpush1.msra.mxu0 %v113
    %378 = vmatprep.subr.mxu0 %v116
    %379 = vmatpush1.msra.mxu0 %v115
    %380 = vmatprep.subr.mxu0 %v118
    %381 = vmatpush1.msra.mxu0 %v117
    %382 = vmatprep.subr.mxu0 %v120
    %383 = vmatpush1.msra.mxu0 %v119
    %384 = vmatprep.subr.mxu0 %v122
    %385 = vmatpush1.msra.mxu0 %v121
    %386 = vmatprep.subr.mxu0 %v124
    %387 = vmatpush1.msra.mxu0 %v123
    %388 = vmatprep.subr.mxu0 %v126
    %389 = vmatpush1.msra.mxu0 %v125
    %390 = vmatprep.subr.mxu0 %v128
    %391 = vmatpush1.msra.mxu0 %v127
    %392 = vmatprep.subr.mxu0 %v130
    %393 = vmatpush1.msra.mxu0 %v129
    %394 = vmatprep.subr.mxu0 %v132
    %395 = vmatpush1.msra.mxu0 %v131
    %396 = vmatprep.subr.mxu0 %v134
    %397 = vmatpush1.msra.mxu0 %v133
    %398 = vmatprep.subr.mxu0 %v136
    %399 = vmatpush1.msra.mxu0 %v135
    %400 = vmatprep.subr.mxu0 %v138
    %401 = vmatpush1.msra.mxu0 %v137
    %402 = vmatprep.subr.mxu0 %v140
    %403 = vmatpush1.msra.mxu0 %v139
    %404 = vmatprep.subr.mxu0 %v142
    %405 = vmatpush1.msra.mxu0 %v141
    %406 = vmatprep.subr.mxu0 %v144
    %407 = vmatpush1.msra.mxu0 %v143
    %408 = vmatprep.subr.mxu0 %v146
    %409 = vmatpush1.msra.mxu0 %v145
    %410 = vmatprep.subr.mxu0 %v148
    %411 = vmatpush1.msra.mxu0 %v147
    %412 = vmatprep.subr.mxu0 %v150
    %413 = vmatpush1.msra.mxu0 %v149
    %414 = vmatprep.subr.mxu0 %v152
    %415 = vmatpush1.msra.mxu0 %v151
    %416 = vmatprep.subr.mxu0 %v154
    %417 = vmatpush1.msra.mxu0 %v153
    %418 = vmatprep.subr.mxu0 %v156
    %419 = vmatpush1.msra.mxu0 %v155
    %420 = vmatprep.subr.mxu0 %v158
    %421 = vmatpush1.msra.mxu0 %v157
    %422 = vmatprep.subr.mxu0 %v160
    %423 = vmatpush1.msra.mxu0 %v159
    %424 = vmatprep.subr.mxu0 %v162
    %425 = vmatpush1.msra.mxu0 %v161
    %426 = vmatprep.subr.mxu0 %v164
    %427 = vmatpush1.msra.mxu0 %v163
    %428 = vmatprep.subr.mxu0 %v166
    %429 = vmatpush1.msra.mxu0 %v165
    %430 = vmatprep.subr.mxu0 %v168
    %431 = vmatpush1.msra.mxu0 %v167
    %432 = vmatprep.mubr.f32.mxu0 %v36
    %433 = vmatmul.mubr.f32.gmra.mrb[0].mxu0 %v35
    %v434 = vpop.f32.mrb[0].mxu0
    %v435 = vadd.f32 %v364, %v434
    %v436 = vpop.f32.mrb[0].mxu0
    %v437 = vadd.f32 %v366, %v436
    %438 = vdwg.mxu0
    %439 = vmatprep.subr.mxu0 %v170
    %440 = vmatpush1.msra.mxu0 %v169
    %441 = vmatprep.subr.mxu0 %v172
    %442 = vmatpush1.msra.mxu0 %v171
    %443 = vmatprep.subr.mxu0 %v174
    %444 = vmatpush1.msra.mxu0 %v173
    %445 = vmatprep.subr.mxu0 %v176
    %446 = vmatpush1.msra.mxu0 %v175
    %447 = vmatprep.subr.mxu0 %v178
    %448 = vmatpush1.msra.mxu0 %v177
    %449 = vmatprep.subr.mxu0 %v180
    %450 = vmatpush1.msra.mxu0 %v179
    %451 = vmatprep.subr.mxu0 %v182
    %452 = vmatpush1.msra.mxu0 %v181
    %453 = vmatprep.subr.mxu0 %v184
    %454 = vmatpush1.msra.mxu0 %v183
    %455 = vmatprep.subr.mxu0 %v186
    %456 = vmatpush1.msra.mxu0 %v185
    %457 = vmatprep.subr.mxu0 %v188
    %458 = vmatpush1.msra.mxu0 %v187
    %459 = vmatprep.subr.mxu0 %v190
    %460 = vmatpush1.msra.mxu0 %v189
    %461 = vmatprep.subr.mxu0 %v192
    %462 = vmatpush1.msra.mxu0 %v191
    %463 = vmatprep.subr.mxu0 %v194
    %464 = vmatpush1.msra.mxu0 %v193
    %465 = vmatprep.subr.mxu0 %v196
    %466 = vmatpush1.msra.mxu0 %v195
    %467 = vmatprep.subr.mxu0 %v198
    %468 = vmatpush1.msra.mxu0 %v197
    %469 = vmatprep.subr.mxu0 %v200
    %470 = vmatpush1.msra.mxu0 %v199
    %471 = vmatprep.subr.mxu0 %v202
    %472 = vmatpush1.msra.mxu0 %v201
    %473 = vmatprep.subr.mxu0 %v204
    %474 = vmatpush1.msra.mxu0 %v203
    %475 = vmatprep.subr.mxu0 %v206
    %476 = vmatpush1.msra.mxu0 %v205
    %477 = vmatprep.subr.mxu0 %v208
    %478 = vmatpush1.msra.mxu0 %v207
    %479 = vmatprep.subr.mxu0 %v210
    %480 = vmatpush1.msra.mxu0 %v209
    %481 = vmatprep.subr.mxu0 %v212
    %482 = vmatpush1.msra.mxu0 %v211
    %483 = vmatprep.subr.mxu0 %v214
    %484 = vmatpush1.msra.mxu0 %v213
    %485 = vmatprep.subr.mxu0 %v216
    %486 = vmatpush1.msra.mxu0 %v215
    %487 = vmatprep.subr.mxu0 %v218
    %488 = vmatpush1.msra.mxu0 %v217
    %489 = vmatprep.subr.mxu0 %v220
    %490 = vmatpush1.msra.mxu0 %v219
    %491 = vmatprep.subr.mxu0 %v222
    %492 = vmatpush1.msra.mxu0 %v221
    %493 = vmatprep.subr.mxu0 %v224
    %494 = vmatpush1.msra.mxu0 %v223
    %495 = vmatprep.subr.mxu0 %v226
    %496 = vmatpush1.msra.mxu0 %v225
    %497 = vmatprep.subr.mxu0 %v228
    %498 = vmatpush1.msra.mxu0 %v227
    %499 = vmatprep.subr.mxu0 %v230
    %500 = vmatpush1.msra.mxu0 %v229
    %501 = vmatprep.subr.mxu0 %v232
    %502 = vmatpush1.msra.mxu0 %v231
    %503 = vmatprep.mubr.f32.mxu0 %v38
    %504 = vmatmul.mubr.f32.gmra.mrb[0].mxu0 %v37
    %v505 = vpop.f32.mrb[0].mxu0
    %v506 = vadd.f32 %v435, %v505
    %v507 = vpop.f32.mrb[0].mxu0
    %v508 = vadd.f32 %v437, %v507
    %509 = vdwg.mxu0
    %510 = vmatprep.subr.mxu0 %v234
    %511 = vmatpush1.msra.mxu0 %v233
    %512 = vmatprep.subr.mxu0 %v236
    %513 = vmatpush1.msra.mxu0 %v235
    %514 = vmatprep.subr.mxu0 %v238
    %515 = vmatpush1.msra.mxu0 %v237
    %516 = vmatprep.subr.mxu0 %v240
    %517 = vmatpush1.msra.mxu0 %v239
    %518 = vmatprep.subr.mxu0 %v242
    %519 = vmatpush1.msra.mxu0 %v241
    %520 = vmatprep.subr.mxu0 %v244
    %521 = vmatpush1.msra.mxu0 %v243
    %522 = vmatprep.subr.mxu0 %v246
    %523 = vmatpush1.msra.mxu0 %v245
    %524 = vmatprep.subr.mxu0 %v248
    %525 = vmatpush1.msra.mxu0 %v247
    %526 = vmatprep.subr.mxu0 %v250
    %527 = vmatpush1.msra.mxu0 %v249
    %528 = vmatprep.subr.mxu0 %v252
    %529 = vmatpush1.msra.mxu0 %v251
    %530 = vmatprep.subr.mxu0 %v254
    %531 = vmatpush1.msra.mxu0 %v253
    %532 = vmatprep.subr.mxu0 %v256
    %533 = vmatpush1.msra.mxu0 %v255
    %534 = vmatprep.subr.mxu0 %v258
    %535 = vmatpush1.msra.mxu0 %v257
    %536 = vmatprep.subr.mxu0 %v260
    %537 = vmatpush1.msra.mxu0 %v259
    %538 = vmatprep.subr.mxu0 %v262
    %539 = vmatpush1.msra.mxu0 %v261
    %540 = vmatprep.subr.mxu0 %v264
    %541 = vmatpush1.msra.mxu0 %v263
    %542 = vmatprep.subr.mxu0 %v266
    %543 = vmatpush1.msra.mxu0 %v265
    %544 = vmatprep.subr.mxu0 %v268
    %545 = vmatpush1.msra.mxu0 %v267
    %546 = vmatprep.subr.mxu0 %v270
    %547 = vmatpush1.msra.mxu0 %v269
    %548 = vmatprep.subr.mxu0 %v272
    %549 = vmatpush1.msra.mxu0 %v271
    %550 = vmatprep.subr.mxu0 %v274
    %551 = vmatpush1.msra.mxu0 %v273
    %552 = vmatprep.subr.mxu0 %v276
    %553 = vmatpush1.msra.mxu0 %v275
    %554 = vmatprep.subr.mxu0 %v278
    %555 = vmatpush1.msra.mxu0 %v277
    %556 = vmatprep.subr.mxu0 %v280
    %557 = vmatpush1.msra.mxu0 %v279
    %558 = vmatprep.subr.mxu0 %v282
    %559 = vmatpush1.msra.mxu0 %v281
    %560 = vmatprep.subr.mxu0 %v284
    %561 = vmatpush1.msra.mxu0 %v283
    %562 = vmatprep.subr.mxu0 %v286
    %563 = vmatpush1.msra.mxu0 %v285
    %564 = vmatprep.subr.mxu0 %v288
    %565 = vmatpush1.msra.mxu0 %v287
    %566 = vmatprep.subr.mxu0 %v290
    %567 = vmatpush1.msra.mxu0 %v289
    %568 = vmatprep.subr.mxu0 %v292
    %569 = vmatpush1.msra.mxu0 %v291
    %570 = vmatprep.subr.mxu0 %v294
    %571 = vmatpush1.msra.mxu0 %v293
    %572 = vmatprep.subr.mxu0 %v296
    %573 = vmatpush1.msra.mxu0 %v295
    %574 = vmatprep.mubr.f32.mxu0 %v40
    %575 = vmatmul.mubr.f32.gmra.mrb[0].mxu0 %v39
    %v576 = vpop.f32.mrb[0].mxu0
    %v577 = vadd.f32 %v506, %v576
    %v578 = vpop.f32.mrb[0].mxu0
    %v579 = vadd.f32 %v508, %v578
    %580 = vdwg.mxu0
    %v581 = vld [vmem:[%s2] sm:$0x1]
    %v583 = vlaneseq
    %v584 = vshrl.u32 %v583, 7
    %v585 = vsub.s32 0, %v584
    %v586 = vrot.slane %v581, %v585
    %v588 = vadd.f32 %v577, %v586
    %v589 = vand.u32 2147483647, %v588
    %vm590 = vcmp.le.f32.partialorder %v589, 0.7853982
    %vm591 = vcmp.lt.s32.totalorder %v588, 0
    %v592 = vand.u32 %v588, 2139095040
    %v593 = vshrl.u32 %v592, 23
    %v594 = vsub.s32 %v593, 127
    %v595 = vand.u32 2147483647, %v588
    %v596 = vand.u32 %v595, 8388607
    %v597 = vor.u32 %v596, 8388608
    %v598 = vsub.s32 0, %v597
    %v599 = vadd.s32 %v594, 1
    %vm600 = vcmp.gt.s32.totalorder %v599, 0
    %v601 = vsel %vm600, %v599, 0
    %v602 = vshrl.u32 %v601, 5
    %v603 = vand.u32 %v601, 31
    %v604 = vsub.s32 32, %v603
    %v605 = vshrl.u32 683565275, %v604
    %v606 = vshll.u32 683565275, %v603
    %v607 = vshrl.u32 2475754826, %v604
    %v608 = vor.u32 %v606, %v607
    %v609 = vshll.u32 2475754826, %v603
    %v610 = vshrl.u32 2131351028, %v604
    %v611 = vor.u32 %v609, %v610
    %v612 = vshll.u32 2131351028, %v603
    %v613 = vshrl.u32 2102212464, %v604
    %v614 = vor.u32 %v612, %v613
    %v615 = vshll.u32 2102212464, %v603
    %v616 = vshrl.u32 920167782, %v604
    %v617 = vor.u32 %v615, %v616
    %v618 = vshll.u32 920167782, %v603
    %v619 = vshrl.u32 1326507024, %v604
    %v620 = vor.u32 %v618, %v619
    %vm621 = vcmp.lt.s32.totalorder %v602, 1
    %vm622 = vcmp.lt.s32.totalorder %v602, 2
    %vm623 = vcmp.lt.s32.totalorder %v602, 3
    %vm624 = vcmp.lt.s32.totalorder %v602, 4
    %v625 = vsel %vm621, %v605, %v608
    %v626 = vsel %vm624, %v614, 2102212464
    %v627 = vsel %vm623, %v611, %v626
    %v628 = vsel %vm622, %v625, %v627
    %v629 = vsel %vm621, %v608, %v611
    %v630 = vsel %vm624, %v617, 920167782
    %v631 = vsel %vm623, %v614, %v630
    %v632 = vsel %vm622, %v629, %v631
    %v633 = vsel %vm621, %v611, %v614
    %v634 = vsel %vm624, %v620, 1326507024
    %v635 = vsel %vm623, %v617, %v634
    %v636 = vsel %vm622, %v633, %v635
    %v637 = vshll.u32 %v597, 8
    %v638 = vmul.u32.u64.compose %v637, %v636
    %v639 = vextract.low.u32 %v638
    %v640 = vextract.high.u32 %v638
    %v641 = vmul.u32.u64.compose %v637, %v632
    %v642 = vextract.low.u32 %v641
    %v643 = vextract.high.u32 %v641
    %v644 = vmul.u32 %v637, %v628
    %v645 = vadd.s32 %v640, %v642
    %vm646 = vc.u32 %v640, %v642
    %v647 = vadd.s32 %v643, 1
    %v648 = vsel %vm646, %v647, %v643
    %v649 = vadd.s32 %v644, %v648
    %v650 = vadd.s32 %v649, 536870912
    %v651 = vshrl.u32 %v650, 30
    %v652 = vshll.u32 %v651, 30
    %v653 = vsub.s32 %v649, %v652
    %vm654 = vcmp.lt.s32.totalorder %v653, 0
    %v655 = vsub.s32 0, %v653
    %v656 = vsel %vm654, %v655, %v653
    %v657 = vclz %v656
    %v658 = vsub.s32 %v657, 2
    %vm659 = vcmp.gt.s32.totalorder 0, %v658
    %v660 = vsel %vm659, 0, %v658
    %v661 = vsub.s32 32, %v660
    %v662 = vshll.u32 %v653, %v660
    %v663 = vshrl.u32 %v645, %v661
    %v664 = vor.u32 %v662, %v663
    %v665 = vsub.s32 4294967266, %v660
    %v666 = vadd.s32 %v665, 127
    %v667 = vshll.u32 %v666, 23
    %v668 = vor.u32 4788187, %v667
    %v669 = vand.u32 2147483647, %v668
    %v671 = vcvt.s32.f32 %v664
    %v672 = vmul.f32 %v671, %v669
    %v673 = vxor.u32 %v672, 2147483648
    %v674 = vsel %vm591, %v673, %v672
    %v675 = vsub.s32 4, %v651
    %v676 = vsel %vm591, %v675, %v651
    %v677 = vsel %vm590, %v588, %v674
    %v678 = vsel %vm590, 0, %v676
    %v679 = vcosq.f32.pop %v677
    %v680 = vsinq.f32.pop %v677
    %vm681 = vweird.f32 %v588
    %v682 = vadd.s32 %v678, 3
    %v683 = vand.u32 %v682, 3
    %vm684 = vcmp.lt.s32.totalorder %v683, 2
    %vm685 = vcmp.eq.s32.totalorder %v683, 0
    %v686 = vxor.u32 %v680, 2147483648
    %v687 = vsel %vm685, %v679, %v686
    %vm688 = vcmp.eq.s32.totalorder %v683, 2
    %v689 = vxor.u32 %v679, 2147483648
    %v690 = vsel %vm688, %v689, %v680
    %v691 = vsel %vm684, %v687, %v690
    %v692 = vsel %vm681, nan, %v691
    %v693 = vld [vmem:[%s3] sm:$0xff]
    %v694 = vld [vmem:[%s3 + $0x8] sm:$0xff]
    %v695 = vld [vmem:[%s3 + $0x10] sm:$0xff]
    %v696 = vld [vmem:[%s3 + $0x18] sm:$0xff]
    %v697 = vld [vmem:[%s3 + $0x20] sm:$0xff]
    %v698 = vld [vmem:[%s3 + $0x28] sm:$0xff]
    %v699 = vld [vmem:[%s3 + $0x30] sm:$0xff]
    %v700 = vld [vmem:[%s3 + $0x38] sm:$0xff]
    %vm701 = vcmask 523264
    %v703 = vsel %vm701, %v692, 0
    %705 = vmatprep.subr.mxu0 0.0
    %706 = vmatpush1.msra.mxu0 %v693
    %707 = vmatprep.subr.mxu0 0.0
    %708 = vmatpush1.msra.mxu0 %v694
    %709 = vmatprep.subr.mxu0 0.0
    %710 = vmatpush1.msra.mxu0 %v695
    %711 = vmatprep.subr.mxu0 0.0
    %712 = vmatpush1.msra.mxu0 %v696
    %713 = vmatprep.subr.mxu0 0.0
    %714 = vmatpush1.msra.mxu0 %v697
    %715 = vmatprep.subr.mxu0 0.0
    %716 = vmatpush1.msra.mxu0 %v698
    %717 = vmatprep.subr.mxu0 0.0
    %718 = vmatpush1.msra.mxu0 %v699
    %719 = vmatprep.subr.mxu0 0.0
    %720 = vmatpush1.msra.mxu0 %v700
    %721 = vmatprep.subr.mxu0 0.0
    %722 = vmatpush1.msra.mxu0 0.0
    %723 = vmatprep.subr.mxu0 0.0
    %724 = vmatpush1.msra.mxu0 0.0
    %725 = vmatprep.subr.mxu0 0.0
    %726 = vmatpush1.msra.mxu0 0.0
    %727 = vmatprep.subr.mxu0 0.0
    %728 = vmatpush1.msra.mxu0 0.0
    %729 = vmatprep.subr.mxu0 0.0
    %730 = vmatpush1.msra.mxu0 0.0
    %731 = vmatprep.subr.mxu0 0.0
    %732 = vmatpush1.msra.mxu0 0.0
    %733 = vmatprep.subr.mxu0 0.0
    %734 = vmatpush1.msra.mxu0 0.0
    %735 = vmatprep.subr.mxu0 0.0
    %736 = vmatpush1.msra.mxu0 0.0
    %737 = vmatprep.subr.mxu0 0.0
    %738 = vmatpush1.msra.mxu0 0.0
    %739 = vmatprep.subr.mxu0 0.0
    %740 = vmatpush1.msra.mxu0 0.0
    %741 = vmatprep.subr.mxu0 0.0
    %742 = vmatpush1.msra.mxu0 0.0
    %743 = vmatprep.subr.mxu0 0.0
    %744 = vmatpush1.msra.mxu0 0.0
    %745 = vmatprep.subr.mxu0 0.0
    %746 = vmatpush1.msra.mxu0 0.0
    %747 = vmatprep.subr.mxu0 0.0
    %748 = vmatpush1.msra.mxu0 0.0
    %749 = vmatprep.subr.mxu0 0.0
    %750 = vmatpush1.msra.mxu0 0.0
    %751 = vmatprep.subr.mxu0 0.0
    %752 = vmatpush1.msra.mxu0 0.0
    %753 = vmatprep.subr.mxu0 0.0
    %754 = vmatpush1.msra.mxu0 0.0
    %755 = vmatprep.subr.mxu0 0.0
    %756 = vmatpush1.msra.mxu0 0.0
    %757 = vmatprep.subr.mxu0 0.0
    %758 = vmatpush1.msra.mxu0 0.0
    %759 = vmatprep.subr.mxu0 0.0
    %760 = vmatpush1.msra.mxu0 0.0
    %761 = vmatprep.subr.mxu0 0.0
    %762 = vmatpush1.msra.mxu0 0.0
    %763 = vmatprep.subr.mxu0 0.0
    %764 = vmatpush1.msra.mxu0 0.0
    %765 = vmatprep.subr.mxu0 0.0
    %766 = vmatpush1.msra.mxu0 0.0
    %767 = vmatprep.subr.mxu0 0.0
    %768 = vmatpush1.msra.mxu0 0.0
    %769 = vmatprep.mubr.f32.mxu0 0.0
    %770 = vmatmul.mubr.f32.gmra.mrb[0].mxu0 %v703
    %v771 = vpop.f32.mrb[0].mxu0
    %v772 = vadd.f32 0.0, %v771
    %v773 = vpop.f32.mrb[0].mxu0
    %774 = vdwg.mxu0
    %v775 = vadd.f32 %v579, %v772
    %v776 = vld [vmem:[%s4] sm:$0x1]
    %v778 = vlaneseq
    %v779 = vshrl.u32 %v778, 7
    %v780 = vsub.s32 0, %v779
    %v781 = vrot.slane %v776, %v780
    %v783 = vadd.f32 %v775, %v781
    %v784 = vmax.f32 %v783, 0.0
    %v785 = vld [vmem:[%s5] sm:$0xff]
    %v786 = vld [vmem:[%s5 + $0x8] sm:$0xff]
    %v787 = vld [vmem:[%s5 + $0x10] sm:$0xff]
    %v788 = vld [vmem:[%s5 + $0x18] sm:$0xff]
    %v789 = vld [vmem:[%s6] sm:$0x1]
    %v791 = vlaneseq
    %v792 = vshrl.u32 %v791, 7
    %v793 = vsub.s32 0, %v792
    %v794 = vrot.slane %v789, %v793
    %vm796 = vcmask 261120
    %v798 = vsel %vm796, %v784, 0
    %800 = vmatprep.subr.mxu0 0.0
    %801 = vmatpush1.msra.mxu0 %v785
    %802 = vmatprep.subr.mxu0 0.0
    %803 = vmatpush1.msra.mxu0 %v786
    %804 = vmatprep.subr.mxu0 0.0
    %805 = vmatpush1.msra.mxu0 %v787
    %806 = vmatprep.subr.mxu0 0.0
    %807 = vmatpush1.msra.mxu0 %v788
    %808 = vmatprep.subr.mxu0 0.0
    %809 = vmatpush1.msra.mxu0 0.0
    %810 = vmatprep.subr.mxu0 0.0
    %811 = vmatpush1.msra.mxu0 0.0
    %812 = vmatprep.subr.mxu0 0.0
    %813 = vmatpush1.msra.mxu0 0.0
    %814 = vmatprep.subr.mxu0 0.0
    %815 = vmatpush1.msra.mxu0 0.0
    %816 = vmatprep.subr.mxu0 0.0
    %817 = vmatpush1.msra.mxu0 0.0
    %818 = vmatprep.subr.mxu0 0.0
    %819 = vmatpush1.msra.mxu0 0.0
    %820 = vmatprep.subr.mxu0 0.0
    %821 = vmatpush1.msra.mxu0 0.0
    %822 = vmatprep.subr.mxu0 0.0
    %823 = vmatpush1.msra.mxu0 0.0
    %824 = vmatprep.subr.mxu0 0.0
    %825 = vmatpush1.msra.mxu0 0.0
    %826 = vmatprep.subr.mxu0 0.0
    %827 = vmatpush1.msra.mxu0 0.0
    %828 = vmatprep.subr.mxu0 0.0
    %829 = vmatpush1.msra.mxu0 0.0
    %830 = vmatprep.subr.mxu0 0.0
    %831 = vmatpush1.msra.mxu0 0.0
    %832 = vmatprep.subr.mxu0 0.0
    %833 = vmatpush1.msra.mxu0 0.0
    %834 = vmatprep.subr.mxu0 0.0
    %835 = vmatpush1.msra.mxu0 0.0
    %836 = vmatprep.subr.mxu0 0.0
    %837 = vmatpush1.msra.mxu0 0.0
    %838 = vmatprep.subr.mxu0 0.0
    %839 = vmatpush1.msra.mxu0 0.0
    %840 = vmatprep.subr.mxu0 0.0
    %841 = vmatpush1.msra.mxu0 0.0
    %842 = vmatprep.subr.mxu0 0.0
    %843 = vmatpush1.msra.mxu0 0.0
    %844 = vmatprep.subr.mxu0 0.0
    %845 = vmatpush1.msra.mxu0 0.0
    %846 = vmatprep.subr.mxu0 0.0
    %847 = vmatpush1.msra.mxu0 0.0
    %848 = vmatprep.subr.mxu0 0.0
    %849 = vmatpush1.msra.mxu0 0.0
    %850 = vmatprep.subr.mxu0 0.0
    %851 = vmatpush1.msra.mxu0 0.0
    %852 = vmatprep.subr.mxu0 0.0
    %853 = vmatpush1.msra.mxu0 0.0
    %854 = vmatprep.subr.mxu0 0.0
    %855 = vmatpush1.msra.mxu0 0.0
    %856 = vmatprep.subr.mxu0 0.0
    %857 = vmatpush1.msra.mxu0 0.0
    %858 = vmatprep.subr.mxu0 0.0
    %859 = vmatpush1.msra.mxu0 0.0
    %860 = vmatprep.subr.mxu0 0.0
    %861 = vmatpush1.msra.mxu0 0.0
    %862 = vmatprep.subr.mxu0 0.0
    %863 = vmatpush1.msra.mxu0 0.0
    %864 = vmatprep.mubr.f32.mxu0 0.0
    %865 = vmatmul.mubr.f32.gmra.mrb[0].mxu0 %v798
    %v866 = vpop.f32.mrb[0].mxu0
    %v867 = vadd.f32 %v794, %v866
    %v868 = vpop.f32.mrb[0].mxu0
    %869 = vdwg.mxu0
    %v870 = vmax.f32 %v867, 0.0
    %v871 = vld [vmem:[%s7] sm:$0xff]
    %v872 = vld [vmem:[%s7 + $0x8] sm:$0xff]
    %v873 = vld [vmem:[%s7 + $0x10] sm:$0xff]
    %v874 = vld [vmem:[%s7 + $0x18] sm:$0xff]
    %v875 = vld [vmem:[%s8] sm:$0x1]
    %v877 = vlaneseq
    %v878 = vshrl.u32 %v877, 7
    %v879 = vsub.s32 0, %v878
    %v880 = vrot.slane %v875, %v879
    %v883 = vsel %vm796, %v870, 0
    %885 = vmatprep.subr.mxu0 0.0
    %886 = vmatpush1.msra.mxu0 %v871
    %887 = vmatprep.subr.mxu0 0.0
    %888 = vmatpush1.msra.mxu0 %v872
    %889 = vmatprep.subr.mxu0 0.0
    %890 = vmatpush1.msra.mxu0 %v873
    %891 = vmatprep.subr.mxu0 0.0
    %892 = vmatpush1.msra.mxu0 %v874
    %893 = vmatprep.subr.mxu0 0.0
    %894 = vmatpush1.msra.mxu0 0.0
    %895 = vmatprep.subr.mxu0 0.0
    %896 = vmatpush1.msra.mxu0 0.0
    %897 = vmatprep.subr.mxu0 0.0
    %898 = vmatpush1.msra.mxu0 0.0
    %899 = vmatprep.subr.mxu0 0.0
    %900 = vmatpush1.msra.mxu0 0.0
    %901 = vmatprep.subr.mxu0 0.0
    %902 = vmatpush1.msra.mxu0 0.0
    %903 = vmatprep.subr.mxu0 0.0
    %904 = vmatpush1.msra.mxu0 0.0
    %905 = vmatprep.subr.mxu0 0.0
    %906 = vmatpush1.msra.mxu0 0.0
    %907 = vmatprep.subr.mxu0 0.0
    %908 = vmatpush1.msra.mxu0 0.0
    %909 = vmatprep.subr.mxu0 0.0
    %910 = vmatpush1.msra.mxu0 0.0
    %911 = vmatprep.subr.mxu0 0.0
    %912 = vmatpush1.msra.mxu0 0.0
    %913 = vmatprep.subr.mxu0 0.0
    %914 = vmatpush1.msra.mxu0 0.0
    %915 = vmatprep.subr.mxu0 0.0
    %916 = vmatpush1.msra.mxu0 0.0
    %917 = vmatprep.subr.mxu0 0.0
    %918 = vmatpush1.msra.mxu0 0.0
    %919 = vmatprep.subr.mxu0 0.0
    %920 = vmatpush1.msra.mxu0 0.0
    %921 = vmatprep.subr.mxu0 0.0
    %922 = vmatpush1.msra.mxu0 0.0
    %923 = vmatprep.subr.mxu0 0.0
    %924 = vmatpush1.msra.mxu0 0.0
    %925 = vmatprep.subr.mxu0 0.0
    %926 = vmatpush1.msra.mxu0 0.0
    %927 = vmatprep.subr.mxu0 0.0
    %928 = vmatpush1.msra.mxu0 0.0
    %929 = vmatprep.subr.mxu0 0.0
    %930 = vmatpush1.msra.mxu0 0.0
    %931 = vmatprep.subr.mxu0 0.0
    %932 = vmatpush1.msra.mxu0 0.0
    %933 = vmatprep.subr.mxu0 0.0
    %934 = vmatpush1.msra.mxu0 0.0
    %935 = vmatprep.subr.mxu0 0.0
    %936 = vmatpush1.msra.mxu0 0.0
    %937 = vmatprep.subr.mxu0 0.0
    %938 = vmatpush1.msra.mxu0 0.0
    %939 = vmatprep.subr.mxu0 0.0
    %940 = vmatpush1.msra.mxu0 0.0
    %941 = vmatprep.subr.mxu0 0.0
    %942 = vmatpush1.msra.mxu0 0.0
    %943 = vmatprep.subr.mxu0 0.0
    %944 = vmatpush1.msra.mxu0 0.0
    %945 = vmatprep.subr.mxu0 0.0
    %946 = vmatpush1.msra.mxu0 0.0
    %947 = vmatprep.subr.mxu0 0.0
    %948 = vmatpush1.msra.mxu0 0.0
    %949 = vmatprep.mubr.f32.mxu0 0.0
    %950 = vmatmul.mubr.f32.gmra.mrb[0].mxu0 %v883
    %v951 = vpop.f32.mrb[0].mxu0
    %v952 = vadd.f32 %v880, %v951
    %v953 = vpop.f32.mrb[0].mxu0
    %954 = vdwg.mxu0
    %955 = vst [vmem:[#allocation2] sm:$0xff] %v952
    // Predicated region
    $region38: #{tpu_custom_call.1} parent=1 // pred_check
      _
    $region39: #{tpu_custom_call.1} parent=1 // pred_check_branch
      %957 = sbr.rel (0) target = $region41
    $region40: #{tpu_custom_call.1} parent=1 // pred_region
      %s959 = ssub.s32 128, 128
      %960 = vsyncadd [#allocation3], %s959
      %s962 = sshll.u32 [#allocation2], 4
      %s963 = int_to_ptr.vmem [resolvable:$true] %s962
      %965 = dma.vmem_to_hbm [thread:$0]  %s963, 128, %s9, [#allocation3]
    $region41: #{tpu_custom_call.1} parent=1 // pred_fallthru
      _
    // Predicated region
    $region42: #{tpu_custom_call.1} parent=1 // pred_check
      _
    $region43: #{tpu_custom_call.1} parent=1 // pred_check_branch
      %967 = sbr.rel (0) target = $region45
    $region44: #{tpu_custom_call.1} parent=1 // pred_region
      %968 = dma.done [#allocation3], 128
    $region45: #{tpu_custom_call.1} parent=1 // pred_fallthru
      _
    %969 = vsyncpa [#allocation3], 1

</llo_original>
